<compile_context>
chip_gen: v7x
topology: tpu7x:2x2x1
jax: 0.10.0
libtpu: 0.0.40
codegen_flags: <defaults>
</compile_context>

<pallas_src>
import jax
import jax.numpy as jnp
from jax.experimental import pallas as pl
from jax.experimental.pallas import tpu as pltpu

_ADD_CONST = -0.030000000000000027
_LANES = 128


def _add_cat_kernel(x3_ref, x8_ref, x12_ref, o_ref):
    # Blocks per grid step (all lane/sublane dense -> unmasked vld/vst):
    #   x*_ref : (1, 1, Tr, 128)
    #   o_ref  : (1, 3, Tr, 128)
    x4 = (x3_ref[...].astype(jnp.float32) + _ADD_CONST).astype(o_ref.dtype)
    o_ref[:, 0:1, :, :] = x4
    o_ref[:, 1:2, :, :] = x8_ref[...]
    o_ref[:, 2:3, :, :] = x12_ref[...]


def _round_up(x, m):
    return ((x + m - 1) // m) * m


def _pick_row_tile(n, rows, itemsize, vmem_budget_bytes):
    """Rows (of 128 lanes) per grid step, sized from a VMEM byte budget."""
    if rows % 8 != 0:
        # Block dim equal to the full array dim is always legal.
        return rows
    # Per grid step: 3 input slabs + one 3-channel output slab, double-buffered.
    bytes_per_row = 2 * 6 * _LANES * itemsize
    budget_rows = max(8, (vmem_budget_bytes // bytes_per_row) // 8 * 8)
    if budget_rows < rows:
        return budget_rows                      # several full 8-aligned tiles
    if n == 1 and rows >= 16:
        # Whole problem fits in one block: split into two ~equal 8-aligned
        # tiles so v7x's second TensorCore shares the streaming work.
        return min(rows, _round_up((rows + 1) // 2, 8))
    return rows


def add_cat(x3, x8, x12, *, vmem_budget_bytes=12 * 1024 * 1024,
            min_pallas_elems=1 << 16):
    """out = concat([x3 + (-0.03...), x8, x12], axis=1) for NCHW inputs, C == 1."""
    assert x3.shape == x8.shape == x12.shape
    assert x3.dtype == x8.dtype == x12.dtype
    n, c, h, w = x3.shape
    assert c == 1
    hw = h * w

    # Small problems / awkward spatial sizes: let XLA fuse (lower dispatch cost).
    if n * 3 * hw < min_pallas_elems or hw % _LANES != 0:
        return jnp.concatenate(
            [x3 + jnp.asarray(_ADD_CONST, x3.dtype), x8, x12], axis=1)

    rows = hw // _LANES
    itemsize = jnp.dtype(x3.dtype).itemsize
    t_rows = _pick_row_tile(n, rows, itemsize, vmem_budget_bytes)
    grid = (n, pl.cdiv(rows, t_rows))

    # Sublane/lane-dense views (free, row-major-preserving reshapes).
    x3v = x3.reshape(n, 1, rows, _LANES)
    x8v = x8.reshape(n, 1, rows, _LANES)
    x12v = x12.reshape(n, 1, rows, _LANES)

    in_spec = pl.BlockSpec((1, 1, t_rows, _LANES), lambda i, j: (i, 0, j, 0))
    out_spec = pl.BlockSpec((1, 3, t_rows, _LANES), lambda i, j: (i, 0, j, 0))

    out = pl.pallas_call(
        _add_cat_kernel,
        out_shape=jax.ShapeDtypeStruct((n, 3, rows, _LANES), x3.dtype),
        grid=grid,
        in_specs=[in_spec, in_spec, in_spec],
        out_specs=out_spec,
        compiler_params=pltpu.CompilerParams(
            dimension_semantics=("parallel", "parallel"),
            vmem_limit_bytes=32 * 1024 * 1024,
        ),
    )(x3v, x8v, x12v)
    return out.reshape(n, 3, h, w)


if __name__ == "__main__":
    key = jax.random.PRNGKey(0)
    k3, k8, k12 = jax.random.split(key, 3)
    # The module's actual shapes: [1, 1, 224, 224]  (H*W = 50176 = 392 * 128).
    N, H, W = 1, 224, 224
    x3 = jax.random.normal(k3, (N, 1, H, W), dtype=jnp.float32)
    x8 = jax.random.normal(k8, (N, 1, H, W), dtype=jnp.float32)
    x12 = jax.random.normal(k12, (N, 1, H, W), dtype=jnp.float32)

    out = jax.block_until_ready(add_cat(x3, x8, x12))

    # Reference check in plain JAX.
    ref = jnp.concatenate([x3 + _ADD_CONST, x8, x12], axis=1)
    assert out.shape == (N, 3, H, W)
    assert jnp.allclose(out, ref, atol=1e-6), "mismatch vs reference"

    print("KERNEL_OK")
</pallas_src>

<mosaic_0001>
module attributes {stable_mosaic.version = 11 : i64} {
  func.func @_add_cat_kernel(%arg0: i32, %arg1: i32, %arg2: memref<1x1x200x128xf32, #tpu.memory_space<vmem>>, %arg3: memref<1x1x200x128xf32, #tpu.memory_space<vmem>>, %arg4: memref<1x1x200x128xf32, #tpu.memory_space<vmem>>, %arg5: memref<1x3x200x128xf32, #tpu.memory_space<vmem>>) attributes {dimension_semantics = [#tpu.dimension_semantics<parallel>, #tpu.dimension_semantics<parallel>], iteration_bounds = array<i64: 1, 2>, scalar_prefetch = 0 : i64, scratch_operands = 0 : i64, tpu.core_type = #tpu.core_type<tc>, window_params = [{transform_indices = @transform_0, window_bounds = array<i64: 1, 1, 200, 128>}, {transform_indices = @transform_1, window_bounds = array<i64: 1, 1, 200, 128>}, {transform_indices = @transform_2, window_bounds = array<i64: 1, 1, 200, 128>}, {transform_indices = @transform_3, window_bounds = array<i64: 1, 3, 200, 128>}]} {
    %c0 = arith.constant 0 : index
    %c0_0 = arith.constant 0 : index
    %c0_1 = arith.constant 0 : index
    %c0_2 = arith.constant 0 : index
    %0 = vector.load %arg2[%c0, %c0_0, %c0_1, %c0_2] : memref<1x1x200x128xf32, #tpu.memory_space<vmem>>, vector<1x1x200x128xf32>
    %cst = arith.constant -3.000000e-02 : f32
    %1 = vector.broadcast %cst : f32 to vector<1x1x200x128xf32>
    %2 = arith.addf %0, %1 : vector<1x1x200x128xf32>
    %c0_3 = arith.constant 0 : index
    %c0_4 = arith.constant 0 : index
    %c0_5 = arith.constant 0 : index
    %c0_6 = arith.constant 0 : index
    %3 = vector.load %arg5[%c0_3, %c0_4, %c0_5, %c0_6] : memref<1x3x200x128xf32, #tpu.memory_space<vmem>>, vector<1x1x200x128xf32>
    tpu.vector_store %arg5[%c0_3, %c0_4, %c0_5, %c0_6], %2 {strides = array<i32>} : memref<1x3x200x128xf32, #tpu.memory_space<vmem>>, vector<1x1x200x128xf32>,
    %c0_7 = arith.constant 0 : index
    %c0_8 = arith.constant 0 : index
    %c0_9 = arith.constant 0 : index
    %c0_10 = arith.constant 0 : index
    %4 = vector.load %arg3[%c0_7, %c0_8, %c0_9, %c0_10] : memref<1x1x200x128xf32, #tpu.memory_space<vmem>>, vector<1x1x200x128xf32>
    %c0_11 = arith.constant 0 : index
    %c1 = arith.constant 1 : index
    %c0_12 = arith.constant 0 : index
    %c0_13 = arith.constant 0 : index
    %5 = vector.load %arg5[%c0_11, %c1, %c0_12, %c0_13] : memref<1x3x200x128xf32, #tpu.memory_space<vmem>>, vector<1x1x200x128xf32>
    tpu.vector_store %arg5[%c0_11, %c1, %c0_12, %c0_13], %4 {strides = array<i32>} : memref<1x3x200x128xf32, #tpu.memory_space<vmem>>, vector<1x1x200x128xf32>,
    %c0_14 = arith.constant 0 : index
    %c0_15 = arith.constant 0 : index
    %c0_16 = arith.constant 0 : index
    %c0_17 = arith.constant 0 : index
    %6 = vector.load %arg4[%c0_14, %c0_15, %c0_16, %c0_17] : memref<1x1x200x128xf32, #tpu.memory_space<vmem>>, vector<1x1x200x128xf32>
    %c0_18 = arith.constant 0 : index
    %c2 = arith.constant 2 : index
    %c0_19 = arith.constant 0 : index
    %c0_20 = arith.constant 0 : index
    %7 = vector.load %arg5[%c0_18, %c2, %c0_19, %c0_20] : memref<1x3x200x128xf32, #tpu.memory_space<vmem>>, vector<1x1x200x128xf32>
    tpu.vector_store %arg5[%c0_18, %c2, %c0_19, %c0_20], %6 {strides = array<i32>} : memref<1x3x200x128xf32, #tpu.memory_space<vmem>>, vector<1x1x200x128xf32>,
    return
  }
  func.func @transform_0(%arg0: i32, %arg1: i32) -> (i32, i32, i32, i32) {
    %c0_i32 = arith.constant 0 : i32
    %c0_i32_0 = arith.constant 0 : i32
    %c0_i32_1 = arith.constant 0 : i32
    return %arg0, %c0_i32, %arg1, %c0_i32_0 : i32, i32, i32, i32
  }
  func.func @transform_1(%arg0: i32, %arg1: i32) -> (i32, i32, i32, i32) {
    %c0_i32 = arith.constant 0 : i32
    %c0_i32_0 = arith.constant 0 : i32
    %c0_i32_1 = arith.constant 0 : i32
    return %arg0, %c0_i32, %arg1, %c0_i32_0 : i32, i32, i32, i32
  }
  func.func @transform_2(%arg0: i32, %arg1: i32) -> (i32, i32, i32, i32) {
    %c0_i32 = arith.constant 0 : i32
    %c0_i32_0 = arith.constant 0 : i32
    %c0_i32_1 = arith.constant 0 : i32
    return %arg0, %c0_i32, %arg1, %c0_i32_0 : i32, i32, i32, i32
  }
  func.func @transform_3(%arg0: i32, %arg1: i32) -> (i32, i32, i32, i32) {
    %c0_i32 = arith.constant 0 : i32
    %c0_i32_0 = arith.constant 0 : i32
    %c0_i32_1 = arith.constant 0 : i32
    return %arg0, %c0_i32, %arg1, %c0_i32_0 : i32, i32, i32, i32
  }
}

</mosaic_0001>

<llo_original>
// kernel: tpu_custom_call.1
$region0: #{tpu_custom_call.1}
  #allocation0 [shape = 'u32[]', space=smem, size = 0x4, offset = 0x4, fixed_abs, tag = 'smem constant byte address 0x4 - core index']
  #allocation1 [shape = 'u32[144,128]{1,0:T(1,128)}', space=vmem, size = 0x12000, scoped, tag = 'internal scratch']
  #allocation9 [shape = 's32[]', space=sflag, size = 0x4, offset = 0, fixed_abs, tag = 'sflag constant byte address 0x0 - dummy sync flag']
  %s0 = inlined_call_operand.hbm [shape: f32[1,1,392,128], index: 0, kind: input, shape index: {}]
  %s1 = inlined_call_operand.hbm [shape: f32[1,1,392,128], index: 1, kind: input, shape index: {}]
  %s2 = inlined_call_operand.hbm [shape: f32[1,1,392,128], index: 2, kind: input, shape index: {}]
  %s3 = inlined_call_operand.hbm [shape: f32[1,3,392,128], index: 3, kind: output, shape index: {}]
  %s4 = sld [smem:[#allocation0]]
  $region57: #{tpu_custom_call.1} parent=0
    _
  %s6 = ssub.s32 1, %s4
  %s7 = scalar_select 0, %s6, %s4
  $region1: #{tpu_custom_call.1} parent=0
    #allocation2 [shape = 'u8[204800]{0}', space=vmem, size = 0x32000, scoped, tag = 'input window, operand 0']
    #allocation3 [shape = 's32[2]{0}', space=sflag, size = 0x8, scoped, tag = 'scoped memory for tpu_custom_call.1']
    #allocation4 [shape = 's32[2]{0}', space=sflag, size = 0x8, scoped, tag = 'scoped memory for tpu_custom_call.1']
    #allocation5 [shape = 'u8[204800]{0}', space=vmem, size = 0x32000, scoped, tag = 'input window, operand 1']
    #allocation6 [shape = 's32[2]{0}', space=sflag, size = 0x8, scoped, tag = 'scoped memory for tpu_custom_call.1']
    #allocation7 [shape = 'u8[204800]{0}', space=vmem, size = 0x32000, scoped, tag = 'input window, operand 2']
    #allocation8 [shape = 'u8[614400]{0}', space=vmem, size = 0x96000, scoped, tag = 'output window, operand 0']
    %8 = vsyncpa [#allocation3], 0
    %s9 = scalar_lea.sflag [#allocation3], 1
    %10 = vsyncpa %s9, 0
    %11 = vsyncpa [#allocation6], 0
    %s12 = scalar_lea.sflag [#allocation6], 1
    %13 = vsyncpa %s12, 0
    %14 = vsyncpa [#allocation4], 0
    %s15 = scalar_lea.sflag [#allocation4], 1
    %16 = vsyncpa %s15, 0
    loop: start=0, step=1, limit=4
    $region2: #{tpu_custom_call.1} parent=1 // loop_pre_header
      _
    $region3: #{tpu_custom_call.1} parent=1 // loop_header
      %s18 = sphi 0, %s22
      %p19 = scmp.ge.s32.totalorder %s18, 4
      %s25 = sphi 0, %s37
      %s26 = sphi 0, %s33
      %s27 = sphi 0, %s25
      %s28 = sphi 0, %s26
      %s29 = sphi 0, %s27
      %s30 = sphi 0, %s28
      %s42 = sphi 0, %s44
      %s45 = sphi 0, %s42
      %s46 = sphi 0, %s45
      %s62 = sphi 0, %s46
      %s70 = sphi 0, %s72
      %s73 = sphi 0, %s70
      %s74 = sphi 0, %s73
      %s90 = sphi 0, %s74
      %s98 = sphi 0, %s100
      %s101 = sphi 0, %s98
      %s102 = sphi 0, %s101
      %s118 = sphi 0, %s102
      %s126 = sphi 0, %s128
      %s129 = sphi 0, %s126
      %s130 = sphi 0, %s129
      %s146 = sphi 0, %s130
    $region4: #{tpu_custom_call.1} parent=1 // loop_header_branch
      %21 = sbr.rel (%p19) target = $region8
    $region5: #{tpu_custom_call.1} parent=1 // loop_body
      %s23 = ssub.s32 %s18, 1
      %s24 = ssub.s32 %s18, 2
      %s31 = sadd.s32 1, %s26
      %p32 = scmp.ge.s32.totalorder %s31, 2
      %s33 = scalar_select %p32, 0, %s31
      %s34 = sadd.s32 1, %s25
      %s35 = scalar_select %p32, %s34, %s25
      %p36 = scmp.ge.s32.totalorder %s35, 1
      %s37 = scalar_select %p36, 0, %s35
      %s38 = ssub.s32 %s25, %s37
      %s39 = ssub.s32 %s26, %s33
      %s40 = sor.u32 %s38, %s39
      %p41 = scmp.eq.s32.totalorder %s40, 0
      %s43 = sadd.s32 %s42, 1
      %s44 = scalar_select %p41, %s42, %s43
      %p47 = pneg %p41
      %p48 = scmp.eq.s32.totalorder %s18, 1
      %p49 = por %p47, %p48
      %p50 = scmp.ne.s32.totalorder %s42, %s45
      %p51 = scmp.eq.s32.totalorder %s18, 0
      %p52 = por %p50, %p51
      %p53 = scmp.ne.s32.totalorder %s42, %s45
      %p54 = scmp.eq.s32.totalorder %s23, 1
      %p55 = por %p53, %p54
      %p56 = scmp.ne.s32.totalorder %s45, %s46
      %p57 = scmp.eq.s32.totalorder %s23, 0
      %p58 = por %p56, %p57
      %p59 = scmp.ne.s32.totalorder %s45, %s46
      %p60 = scmp.eq.s32.totalorder %s24, 1
      %p61 = por %p59, %p60
      %p63 = scmp.ne.s32.totalorder %s46, %s62
      %p64 = scmp.eq.s32.totalorder %s24, 0
      %p65 = por %p63, %p64
      %s66 = ssub.s32 %s25, %s37
      %s67 = ssub.s32 %s26, %s33
      %s68 = sor.u32 %s66, %s67
      %p69 = scmp.eq.s32.totalorder %s68, 0
      %s71 = sadd.s32 %s70, 1
      %s72 = scalar_select %p69, %s70, %s71
      %p75 = pneg %p69
      %p76 = scmp.eq.s32.totalorder %s18, 1
      %p77 = por %p75, %p76
      %p78 = scmp.ne.s32.totalorder %s70, %s73
      %p79 = scmp.eq.s32.totalorder %s18, 0
      %p80 = por %p78, %p79
      %p81 = scmp.ne.s32.totalorder %s70, %s73
      %p82 = scmp.eq.s32.totalorder %s23, 1
      %p83 = por %p81, %p82
      %p84 = scmp.ne.s32.totalorder %s73, %s74
      %p85 = scmp.eq.s32.totalorder %s23, 0
      %p86 = por %p84, %p85
      %p87 = scmp.ne.s32.totalorder %s73, %s74
      %p88 = scmp.eq.s32.totalorder %s24, 1
      %p89 = por %p87, %p88
      %p91 = scmp.ne.s32.totalorder %s74, %s90
      %p92 = scmp.eq.s32.totalorder %s24, 0
      %p93 = por %p91, %p92
      %s94 = ssub.s32 %s25, %s37
      %s95 = ssub.s32 %s26, %s33
      %s96 = sor.u32 %s94, %s95
      %p97 = scmp.eq.s32.totalorder %s96, 0
      %s99 = sadd.s32 %s98, 1
      %s100 = scalar_select %p97, %s98, %s99
      %p103 = pneg %p97
      %p104 = scmp.eq.s32.totalorder %s18, 1
      %p105 = por %p103, %p104
      %p106 = scmp.ne.s32.totalorder %s98, %s101
      %p107 = scmp.eq.s32.totalorder %s18, 0
      %p108 = por %p106, %p107
      %p109 = scmp.ne.s32.totalorder %s98, %s101
      %p110 = scmp.eq.s32.totalorder %s23, 1
      %p111 = por %p109, %p110
      %p112 = scmp.ne.s32.totalorder %s101, %s102
      %p113 = scmp.eq.s32.totalorder %s23, 0
      %p114 = por %p112, %p113
      %p115 = scmp.ne.s32.totalorder %s101, %s102
      %p116 = scmp.eq.s32.totalorder %s24, 1
      %p117 = por %p115, %p116
      %p119 = scmp.ne.s32.totalorder %s102, %s118
      %p120 = scmp.eq.s32.totalorder %s24, 0
      %p121 = por %p119, %p120
      %s122 = ssub.s32 %s25, %s37
      %s123 = ssub.s32 %s26, %s33
      %s124 = sor.u32 %s122, %s123
      %p125 = scmp.eq.s32.totalorder %s124, 0
      %s127 = sadd.s32 %s126, 1
      %s128 = scalar_select %p125, %s126, %s127
      %p131 = pneg %p125
      %p132 = scmp.eq.s32.totalorder %s18, 1
      %p133 = por %p131, %p132
      %p134 = scmp.ne.s32.totalorder %s126, %s129
      %p135 = scmp.eq.s32.totalorder %s18, 0
      %p136 = por %p134, %p135
      %p137 = scmp.ne.s32.totalorder %s126, %s129
      %p138 = scmp.eq.s32.totalorder %s23, 1
      %p139 = por %p137, %p138
      %p140 = scmp.ne.s32.totalorder %s129, %s130
      %p141 = scmp.eq.s32.totalorder %s23, 0
      %p142 = por %p140, %p141
      %p143 = scmp.ne.s32.totalorder %s129, %s130
      %p144 = scmp.eq.s32.totalorder %s24, 1
      %p145 = por %p143, %p144
      %p147 = scmp.ne.s32.totalorder %s130, %s146
      %p148 = scmp.eq.s32.totalorder %s24, 0
      %p149 = por %p147, %p148
      %p150 = scmp.le.s32.totalorder 1, %s18
      %p151 = scmp.lt.s32.totalorder %s18, 3
      %p152 = pnand %p150, %p151
      %p153 = pneg %p152
      // Predicated region
      $region9: #{tpu_custom_call.1} parent=5 // pred_check
        _
      $region10: #{tpu_custom_call.1} parent=5 // pred_check_branch
        %155 = sbr.rel (%p152) target = $region12
      $region11: #{tpu_custom_call.1} parent=5 // pred_region
        %s156 = ssub.s32 %s18, 1
      $region12: #{tpu_custom_call.1} parent=5 // pred_fallthru
        _
      %p157 = scmp.lt.s32.totalorder %s18, 2
      // Predicated region
      $region13: #{tpu_custom_call.1} parent=5 // pred_check
        %p158 = pneg %p157
      $region14: #{tpu_custom_call.1} parent=5 // pred_check_branch
        %160 = sbr.rel (%p158) target = $region16
      $region15: #{tpu_custom_call.1} parent=5 // pred_region
        // Predicated region
        $region17: #{tpu_custom_call.1} parent=15 // pred_check
          %p161 = pneg %p52
        $region18: #{tpu_custom_call.1} parent=15 // pred_check_branch
          %163 = sbr.rel (%p161) target = $region20
        $region19: #{tpu_custom_call.1} parent=15 // pred_region
          %s164 = sand.u32 %s42, 1
          %s165 = scalar_lea.sflag [#allocation3], %s164
          %s166 = sand.u32 %s42, 1
          %s167 = smul.addr %s166, 200
          %s168 = scalar_lea.vmem [#allocation2], %s167
          %s169 = smul.u32 25, %s26
          %s170 = ssub.s32 49, %s169
          %p171 = scmp.lt.s32.totalorder %s170, 25
          %s172 = scalar_select %p171, %s170, 25
          %s173 = smul.u32 128, %s172
          %s175 = ssub.s32 3200, %s173
          %176 = vsyncadd %s165, %s175
          %p177 = scmp.ne.s32.totalorder 0, %s173
          %s178 = smul.addr %s25, 49
          %s179 = sadd.s32 %s169, %s178
          %s180 = smul.addr %s179, 128
          %s181 = scalar_lea.hbm %s0, %s180
          %s182 = smul.u32 8, %s172
          %s183 = sshll.u32 %s168, 4
          %s184 = int_to_ptr.vmem [resolvable:$true] %s183
          %s185 = sshll.u32 %s182, 4
          %189 = dma.hbm_to_vmem [thread:$0]  (%p177), %s181, %s185, %s184, %s165, 128, 128, 8
        $region20: #{tpu_custom_call.1} parent=15 // pred_fallthru
          _
        // Predicated region
        $region21: #{tpu_custom_call.1} parent=15 // pred_check
          %p190 = pneg %p80
        $region22: #{tpu_custom_call.1} parent=15 // pred_check_branch
          %192 = sbr.rel (%p190) target = $region24
        $region23: #{tpu_custom_call.1} parent=15 // pred_region
          %s193 = sand.u32 %s18, 1
          %s194 = scalar_lea.sflag [#allocation6], %s193
          %s195 = sand.u32 %s70, 1
          %s196 = smul.addr %s195, 200
          %s197 = scalar_lea.vmem [#allocation5], %s196
          %s198 = smul.u32 25, %s26
          %s199 = ssub.s32 49, %s198
          %p200 = scmp.lt.s32.totalorder %s199, 25
          %s201 = scalar_select %p200, %s199, 25
          %s202 = smul.u32 128, %s201
          %s204 = ssub.s32 3200, %s202
          %205 = vsyncadd %s194, %s204
          %p206 = scmp.ne.s32.totalorder 0, %s202
          %s207 = smul.addr %s25, 49
          %s208 = sadd.s32 %s198, %s207
          %s209 = smul.addr %s208, 128
          %s210 = scalar_lea.hbm %s1, %s209
          %s211 = smul.u32 8, %s201
          %s212 = sshll.u32 %s197, 4
          %s213 = int_to_ptr.vmem [resolvable:$true] %s212
          %s214 = sshll.u32 %s211, 4
          %218 = dma.hbm_to_vmem [thread:$0]  (%p206), %s210, %s214, %s213, %s194, 128, 128, 8
        $region24: #{tpu_custom_call.1} parent=15 // pred_fallthru
          _
        // Predicated region
        $region25: #{tpu_custom_call.1} parent=15 // pred_check
          %p219 = pneg %p108
        $region26: #{tpu_custom_call.1} parent=15 // pred_check_branch
          %221 = sbr.rel (%p219) target = $region28
        $region27: #{tpu_custom_call.1} parent=15 // pred_region
          %s222 = sand.u32 %s18, 1
          %s223 = scalar_lea.sflag [#allocation6], %s222
          %s224 = sand.u32 %s98, 1
          %s225 = smul.addr %s224, 200
          %s226 = scalar_lea.vmem [#allocation7], %s225
          %s227 = smul.u32 25, %s26
          %s228 = ssub.s32 49, %s227
          %p229 = scmp.lt.s32.totalorder %s228, 25
          %s230 = scalar_select %p229, %s228, 25
          %s231 = smul.u32 128, %s230
          %s233 = ssub.s32 3200, %s231
          %234 = vsyncadd %s223, %s233
          %p235 = scmp.ne.s32.totalorder 0, %s231
          %s236 = smul.addr %s25, 49
          %s237 = sadd.s32 %s227, %s236
          %s238 = smul.addr %s237, 128
          %s239 = scalar_lea.hbm %s2, %s238
          %s240 = smul.u32 8, %s230
          %s241 = sshll.u32 %s226, 4
          %s242 = int_to_ptr.vmem [resolvable:$true] %s241
          %s243 = sshll.u32 %s240, 4
          %247 = dma.hbm_to_vmem [thread:$0]  (%p235), %s239, %s243, %s242, %s223, 128, 128, 8
        $region28: #{tpu_custom_call.1} parent=15 // pred_fallthru
          _
      $region16: #{tpu_custom_call.1} parent=5 // pred_fallthru
        _
      %p248 = scmp.le.s32.totalorder 1, %s18
      %p249 = scmp.lt.s32.totalorder %s18, 3
      %p250 = pnand %p248, %p249
      %p251 = pneg %p250
      // Predicated region
      $region29: #{tpu_custom_call.1} parent=5 // pred_check
        _
      $region30: #{tpu_custom_call.1} parent=5 // pred_check_branch
        %253 = sbr.rel (%p250) target = $region32
      $region31: #{tpu_custom_call.1} parent=5 // pred_region
        %s254 = ssub.s32 %s18, 1
        %s255 = sand.u32 %s45, 1
        %s256 = scalar_lea.sflag [#allocation3], %s255
        %s257 = sand.u32 %s45, 1
        %s258 = smul.addr %s257, 200
        %s259 = scalar_lea.vmem [#allocation2], %s258
        // Predicated region
        $region33: #{tpu_custom_call.1} parent=31 // pred_check
          %p260 = pneg %p58
        $region34: #{tpu_custom_call.1} parent=31 // pred_check_branch
          %262 = sbr.rel (%p260) target = $region36
        $region35: #{tpu_custom_call.1} parent=31 // pred_region
          %263 = dma.done %s256, 3200
        $region36: #{tpu_custom_call.1} parent=31 // pred_fallthru
          _
        %s264 = sand.u32 %s23, 1
        %s265 = scalar_lea.sflag [#allocation6], %s264
        %s266 = sand.u32 %s73, 1
        %s267 = smul.addr %s266, 200
        %s268 = scalar_lea.vmem [#allocation5], %s267
        // Predicated region
        $region37: #{tpu_custom_call.1} parent=31 // pred_check
          %p269 = pneg %p86
        $region38: #{tpu_custom_call.1} parent=31 // pred_check_branch
          %271 = sbr.rel (%p269) target = $region40
        $region39: #{tpu_custom_call.1} parent=31 // pred_region
          %272 = dma.done %s265, 3200
        $region40: #{tpu_custom_call.1} parent=31 // pred_fallthru
          _
        %s273 = sand.u32 %s23, 1
        %s274 = scalar_lea.sflag [#allocation6], %s273
        %s275 = sand.u32 %s101, 1
        %s276 = smul.addr %s275, 200
        %s277 = scalar_lea.vmem [#allocation7], %s276
        // Predicated region
        $region41: #{tpu_custom_call.1} parent=31 // pred_check
          %p278 = pneg %p114
        $region42: #{tpu_custom_call.1} parent=31 // pred_check_branch
          %280 = sbr.rel (%p278) target = $region44
        $region43: #{tpu_custom_call.1} parent=31 // pred_region
          %281 = dma.done %s274, 3200
        $region44: #{tpu_custom_call.1} parent=31 // pred_fallthru
          _
        %s282 = sand.u32 %s45, 1
        %s283 = scalar_lea.sflag [#allocation3], %s282
        %s284 = sand.u32 %s45, 1
        %s285 = smul.addr %s284, 200
        %s286 = scalar_lea.vmem [#allocation2], %s285
        %p287 = pneg %p58
        %p288 = pneg %p55
        %s289 = sand.u32 %s23, 1
        %s290 = scalar_lea.sflag [#allocation6], %s289
        %s291 = sand.u32 %s73, 1
        %s292 = smul.addr %s291, 200
        %s293 = scalar_lea.vmem [#allocation5], %s292
        %p294 = pneg %p86
        %p295 = pneg %p83
        %s296 = sand.u32 %s23, 1
        %s297 = scalar_lea.sflag [#allocation6], %s296
        %s298 = sand.u32 %s101, 1
        %s299 = smul.addr %s298, 200
        %s300 = scalar_lea.vmem [#allocation7], %s299
        %p301 = pneg %p114
        %p302 = pneg %p111
        %p303 = pneg %p142
        %p304 = pneg %p139
        %s305 = sand.u32 %s129, 1
        %s306 = scalar_lea.sflag [#allocation4], %s305
        %s307 = sand.u32 %s129, 1
        %s308 = smul.addr %s307, 600
        %s309 = scalar_lea.vmem [#allocation8], %s308
        %s310 = smul.u32 25, %s28
        %s311 = ssub.s32 49, %s310
        %p312 = scmp.lt.s32.totalorder %s311, 25
        %s313 = scalar_select %p312, %s311, 25
        %s314 = smul.u32 128, %s313
        %s315 = smul.u32 25, %s28
        %s316 = ssub.s32 49, %s315
        %p317 = scmp.lt.s32.totalorder %s316, 25
        %s318 = scalar_select %p317, %s316, 25
        %s319 = smul.u32 128, %s318
        %s320 = smul.u32 25, %s28
        %s321 = ssub.s32 49, %s320
        %p322 = scmp.lt.s32.totalorder %s321, 25
        %s323 = scalar_select %p322, %s321, 25
        %s324 = smul.u32 128, %s323
        %s325 = smul.u32 25, %s28
        %s326 = ssub.s32 49, %s325
        %p327 = scmp.lt.s32.totalorder %s326, 25
        %s328 = scalar_select %p327, %s326, 25
        %s329 = smul.u32 384, %s328
        %v330 = vld [vmem:[%s259] sm:$0xff]
        %v331 = vld [vmem:[%s259 + $0x8] sm:$0xff]
        %v332 = vld [vmem:[%s259 + $0x10] sm:$0xff]
        %v333 = vld [vmem:[%s259 + $0x18] sm:$0xff]
        %v334 = vld [vmem:[%s259 + $0x20] sm:$0xff]
        %v335 = vld [vmem:[%s259 + $0x28] sm:$0xff]
        %v336 = vld [vmem:[%s259 + $0x30] sm:$0xff]
        %v337 = vld [vmem:[%s259 + $0x38] sm:$0xff]
        %v338 = vld [vmem:[%s259 + $0x40] sm:$0xff]
        %v339 = vld [vmem:[%s259 + $0x48] sm:$0xff]
        %v340 = vld [vmem:[%s259 + $0x50] sm:$0xff]
        %v341 = vld [vmem:[%s259 + $0x58] sm:$0xff]
        %v342 = vld [vmem:[%s259 + $0x60] sm:$0xff]
        %v343 = vld [vmem:[%s259 + $0x68] sm:$0xff]
        %v344 = vld [vmem:[%s259 + $0x70] sm:$0xff]
        %v345 = vld [vmem:[%s259 + $0x78] sm:$0xff]
        %v346 = vld [vmem:[%s259 + $0x80] sm:$0xff]
        %v347 = vld [vmem:[%s259 + $0x88] sm:$0xff]
        %v348 = vld [vmem:[%s259 + $0x90] sm:$0xff]
        %v349 = vld [vmem:[%s259 + $0x98] sm:$0xff]
        %v350 = vld [vmem:[%s259 + $0xa0] sm:$0xff]
        %v351 = vld [vmem:[%s259 + $0xa8] sm:$0xff]
        %v352 = vld [vmem:[%s259 + $0xb0] sm:$0xff]
        %v353 = vld [vmem:[%s259 + $0xb8] sm:$0xff]
        %v354 = vld [vmem:[%s259 + $0xc0] sm:$0xff]
        %v355 = vadd.f32 %v330, -0.03
        %v356 = vadd.f32 %v331, -0.03
        %v357 = vadd.f32 %v332, -0.03
        %v358 = vadd.f32 %v333, -0.03
        %v359 = vadd.f32 %v334, -0.03
        %v360 = vadd.f32 %v335, -0.03
        %v361 = vadd.f32 %v336, -0.03
        %v362 = vadd.f32 %v337, -0.03
        %v363 = vadd.f32 %v338, -0.03
        %v364 = vadd.f32 %v339, -0.03
        %v365 = vadd.f32 %v340, -0.03
        %v366 = vadd.f32 %v341, -0.03
        %v367 = vadd.f32 %v342, -0.03
        %v368 = vadd.f32 %v343, -0.03
        %v369 = vadd.f32 %v344, -0.03
        %v370 = vadd.f32 %v345, -0.03
        %v371 = vadd.f32 %v346, -0.03
        %v372 = vadd.f32 %v347, -0.03
        %v373 = vadd.f32 %v348, -0.03
        %v374 = vadd.f32 %v349, -0.03
        %v375 = vadd.f32 %v350, -0.03
        %v376 = vadd.f32 %v351, -0.03
        %v377 = vadd.f32 %v352, -0.03
        %v378 = vadd.f32 %v353, -0.03
        %v379 = vadd.f32 %v354, -0.03
        %380 = vst [vmem:[%s309] sm:$0xff] %v355
        %381 = vst [vmem:[%s309 + $0x8] sm:$0xff] %v356
        %382 = vst [vmem:[%s309 + $0x10] sm:$0xff] %v357
        %383 = vst [vmem:[%s309 + $0x18] sm:$0xff] %v358
        %384 = vst [vmem:[%s309 + $0x20] sm:$0xff] %v359
        %385 = vst [vmem:[%s309 + $0x28] sm:$0xff] %v360
        %386 = vst [vmem:[%s309 + $0x30] sm:$0xff] %v361
        %387 = vst [vmem:[%s309 + $0x38] sm:$0xff] %v362
        %388 = vst [vmem:[%s309 + $0x40] sm:$0xff] %v363
        %389 = vst [vmem:[%s309 + $0x48] sm:$0xff] %v364
        %390 = vst [vmem:[%s309 + $0x50] sm:$0xff] %v365
        %391 = vst [vmem:[%s309 + $0x58] sm:$0xff] %v366
        %392 = vst [vmem:[%s309 + $0x60] sm:$0xff] %v367
        %393 = vst [vmem:[%s309 + $0x68] sm:$0xff] %v368
        %394 = vst [vmem:[%s309 + $0x70] sm:$0xff] %v369
        %395 = vst [vmem:[%s309 + $0x78] sm:$0xff] %v370
        %396 = vst [vmem:[%s309 + $0x80] sm:$0xff] %v371
        %397 = vst [vmem:[%s309 + $0x88] sm:$0xff] %v372
        %398 = vst [vmem:[%s309 + $0x90] sm:$0xff] %v373
        %399 = vst [vmem:[%s309 + $0x98] sm:$0xff] %v374
        %400 = vst [vmem:[%s309 + $0xa0] sm:$0xff] %v375
        %401 = vst [vmem:[%s309 + $0xa8] sm:$0xff] %v376
        %402 = vst [vmem:[%s309 + $0xb0] sm:$0xff] %v377
        %403 = vst [vmem:[%s309 + $0xb8] sm:$0xff] %v378
        %404 = vst [vmem:[%s309 + $0xc0] sm:$0xff] %v379
        %v405 = vld [vmem:[%s268] sm:$0xff]
        %v406 = vld [vmem:[%s268 + $0x8] sm:$0xff]
        %v407 = vld [vmem:[%s268 + $0x10] sm:$0xff]
        %v408 = vld [vmem:[%s268 + $0x18] sm:$0xff]
        %v409 = vld [vmem:[%s268 + $0x20] sm:$0xff]
        %v410 = vld [vmem:[%s268 + $0x28] sm:$0xff]
        %v411 = vld [vmem:[%s268 + $0x30] sm:$0xff]
        %v412 = vld [vmem:[%s268 + $0x38] sm:$0xff]
        %v413 = vld [vmem:[%s268 + $0x40] sm:$0xff]
        %v414 = vld [vmem:[%s268 + $0x48] sm:$0xff]
        %v415 = vld [vmem:[%s268 + $0x50] sm:$0xff]
        %v416 = vld [vmem:[%s268 + $0x58] sm:$0xff]
        %v417 = vld [vmem:[%s268 + $0x60] sm:$0xff]
        %v418 = vld [vmem:[%s268 + $0x68] sm:$0xff]
        %v419 = vld [vmem:[%s268 + $0x70] sm:$0xff]
        %v420 = vld [vmem:[%s268 + $0x78] sm:$0xff]
        %v421 = vld [vmem:[%s268 + $0x80] sm:$0xff]
        %v422 = vld [vmem:[%s268 + $0x88] sm:$0xff]
        %v423 = vld [vmem:[%s268 + $0x90] sm:$0xff]
        %v424 = vld [vmem:[%s268 + $0x98] sm:$0xff]
        %v425 = vld [vmem:[%s268 + $0xa0] sm:$0xff]
        %v426 = vld [vmem:[%s268 + $0xa8] sm:$0xff]
        %v427 = vld [vmem:[%s268 + $0xb0] sm:$0xff]
        %v428 = vld [vmem:[%s268 + $0xb8] sm:$0xff]
        %v429 = vld [vmem:[%s268 + $0xc0] sm:$0xff]
        %s430 = scalar_lea.vmem %s309, 200 [#allocation8]
        %431 = vst [vmem:[%s430] sm:$0xff] %v405
        %432 = vst [vmem:[%s430 + $0x8] sm:$0xff] %v406
        %433 = vst [vmem:[%s430 + $0x10] sm:$0xff] %v407
        %434 = vst [vmem:[%s430 + $0x18] sm:$0xff] %v408
        %435 = vst [vmem:[%s430 + $0x20] sm:$0xff] %v409
        %436 = vst [vmem:[%s430 + $0x28] sm:$0xff] %v410
        %437 = vst [vmem:[%s430 + $0x30] sm:$0xff] %v411
        %438 = vst [vmem:[%s430 + $0x38] sm:$0xff] %v412
        %439 = vst [vmem:[%s430 + $0x40] sm:$0xff] %v413
        %440 = vst [vmem:[%s430 + $0x48] sm:$0xff] %v414
        %441 = vst [vmem:[%s430 + $0x50] sm:$0xff] %v415
        %442 = vst [vmem:[%s430 + $0x58] sm:$0xff] %v416
        %443 = vst [vmem:[%s430 + $0x60] sm:$0xff] %v417
        %444 = vst [vmem:[%s430 + $0x68] sm:$0xff] %v418
        %445 = vst [vmem:[%s430 + $0x70] sm:$0xff] %v419
        %446 = vst [vmem:[%s430 + $0x78] sm:$0xff] %v420
        %447 = vst [vmem:[%s430 + $0x80] sm:$0xff] %v421
        %448 = vst [vmem:[%s430 + $0x88] sm:$0xff] %v422
        %449 = vst [vmem:[%s430 + $0x90] sm:$0xff] %v423
        %450 = vst [vmem:[%s430 + $0x98] sm:$0xff] %v424
        %451 = vst [vmem:[%s430 + $0xa0] sm:$0xff] %v425
        %452 = vst [vmem:[%s430 + $0xa8] sm:$0xff] %v426
        %453 = vst [vmem:[%s430 + $0xb0] sm:$0xff] %v427
        %454 = vst [vmem:[%s430 + $0xb8] sm:$0xff] %v428
        %455 = vst [vmem:[%s430 + $0xc0] sm:$0xff] %v429
        %v456 = vld [vmem:[%s277] sm:$0xff]
        %v457 = vld [vmem:[%s277 + $0x8] sm:$0xff]
        %v458 = vld [vmem:[%s277 + $0x10] sm:$0xff]
        %v459 = vld [vmem:[%s277 + $0x18] sm:$0xff]
        %v460 = vld [vmem:[%s277 + $0x20] sm:$0xff]
        %v461 = vld [vmem:[%s277 + $0x28] sm:$0xff]
        %v462 = vld [vmem:[%s277 + $0x30] sm:$0xff]
        %v463 = vld [vmem:[%s277 + $0x38] sm:$0xff]
        %v464 = vld [vmem:[%s277 + $0x40] sm:$0xff]
        %v465 = vld [vmem:[%s277 + $0x48] sm:$0xff]
        %v466 = vld [vmem:[%s277 + $0x50] sm:$0xff]
        %v467 = vld [vmem:[%s277 + $0x58] sm:$0xff]
        %v468 = vld [vmem:[%s277 + $0x60] sm:$0xff]
        %v469 = vld [vmem:[%s277 + $0x68] sm:$0xff]
        %v470 = vld [vmem:[%s277 + $0x70] sm:$0xff]
        %v471 = vld [vmem:[%s277 + $0x78] sm:$0xff]
        %v472 = vld [vmem:[%s277 + $0x80] sm:$0xff]
        %v473 = vld [vmem:[%s277 + $0x88] sm:$0xff]
        %v474 = vld [vmem:[%s277 + $0x90] sm:$0xff]
        %v475 = vld [vmem:[%s277 + $0x98] sm:$0xff]
        %v476 = vld [vmem:[%s277 + $0xa0] sm:$0xff]
        %v477 = vld [vmem:[%s277 + $0xa8] sm:$0xff]
        %v478 = vld [vmem:[%s277 + $0xb0] sm:$0xff]
        %v479 = vld [vmem:[%s277 + $0xb8] sm:$0xff]
        %v480 = vld [vmem:[%s277 + $0xc0] sm:$0xff]
        %s481 = scalar_lea.vmem %s309, 400 [#allocation8]
        %482 = vst [vmem:[%s481] sm:$0xff] %v456
        %483 = vst [vmem:[%s481 + $0x8] sm:$0xff] %v457
        %484 = vst [vmem:[%s481 + $0x10] sm:$0xff] %v458
        %485 = vst [vmem:[%s481 + $0x18] sm:$0xff] %v459
        %486 = vst [vmem:[%s481 + $0x20] sm:$0xff] %v460
        %487 = vst [vmem:[%s481 + $0x28] sm:$0xff] %v461
        %488 = vst [vmem:[%s481 + $0x30] sm:$0xff] %v462
        %489 = vst [vmem:[%s481 + $0x38] sm:$0xff] %v463
        %490 = vst [vmem:[%s481 + $0x40] sm:$0xff] %v464
        %491 = vst [vmem:[%s481 + $0x48] sm:$0xff] %v465
        %492 = vst [vmem:[%s481 + $0x50] sm:$0xff] %v466
        %493 = vst [vmem:[%s481 + $0x58] sm:$0xff] %v467
        %494 = vst [vmem:[%s481 + $0x60] sm:$0xff] %v468
        %495 = vst [vmem:[%s481 + $0x68] sm:$0xff] %v469
        %496 = vst [vmem:[%s481 + $0x70] sm:$0xff] %v470
        %497 = vst [vmem:[%s481 + $0x78] sm:$0xff] %v471
        %498 = vst [vmem:[%s481 + $0x80] sm:$0xff] %v472
        %499 = vst [vmem:[%s481 + $0x88] sm:$0xff] %v473
        %500 = vst [vmem:[%s481 + $0x90] sm:$0xff] %v474
        %501 = vst [vmem:[%s481 + $0x98] sm:$0xff] %v475
        %502 = vst [vmem:[%s481 + $0xa0] sm:$0xff] %v476
        %503 = vst [vmem:[%s481 + $0xa8] sm:$0xff] %v477
        %504 = vst [vmem:[%s481 + $0xb0] sm:$0xff] %v478
        %505 = vst [vmem:[%s481 + $0xb8] sm:$0xff] %v479
        %506 = vst [vmem:[%s481 + $0xc0] sm:$0xff] %v480
        %s507 = sand.u32 %s129, 1
        %s508 = scalar_lea.sflag [#allocation4], %s507
        %s509 = sand.u32 %s129, 1
        %s510 = smul.addr %s509, 600
        %s511 = scalar_lea.vmem [#allocation8], %s510
        // Predicated region
        $region45: #{tpu_custom_call.1} parent=31 // pred_check
          %p512 = pneg %p139
        $region46: #{tpu_custom_call.1} parent=31 // pred_check_branch
          %514 = sbr.rel (%p512) target = $region48
        $region47: #{tpu_custom_call.1} parent=31 // pred_region
          #allocation10 [shape = 'u32[6]{0}', space=smem, size = 0x18, scoped, tag = 'DMA stride descriptor']
          %s515 = smul.u32 25, %s28
          %s516 = ssub.s32 49, %s515
          %p517 = scmp.lt.s32.totalorder %s516, 25
          %s518 = scalar_select %p517, %s516, 25
          %s519 = smul.u32 384, %s518
          %s521 = ssub.s32 9600, %s519
          %522 = vsyncadd %s508, %s521
          %p523 = scmp.ne.s32.totalorder 0, %s519
          %s524 = smul.addr %s27, 147
          %s525 = sadd.s32 %s515, %s524
          %s526 = smul.addr %s525, 128
          %s527 = scalar_lea.hbm %s3, %s526
          %s528 = smul.u32 8, %s518
          %s529 = smul.u32 %s528, 3
          %s531 = sshll.u32 1, 14
          %s532 = sxor.u32 4294967295, %s531
          %s535 = sshll.u32 7, 18
          %s536 = sxor.u32 4294967295, %s535
          %s537 = sand.u32 0, %s536
          %s539 = sor.u32 %s537, 0
          %s541 = sshll.u32 3, 24
          %s542 = sxor.u32 4294967295, %s541
          %s543 = sand.u32 %s539, %s542
          %s545 = sor.u32 %s543, 0
          %s546 = sshll.u32 %s511, 4
          %s547 = int_to_ptr.vmem [resolvable:$true] %s546
          %s548 = sshll.u32 %s529, 4
          %553 = sst [smem:[#allocation10]] 3200
          %s554 = scalar_lea.smem [#allocation10], 1
          %555 = sst [smem:[%s554]] 6272
          %s556 = scalar_lea.smem [#allocation10], 2
          %557 = sst [smem:[%s556]] %s518
          %s558 = scalar_lea.smem [#allocation10], 3
          %559 = sst [smem:[%s558]] 128
          %s560 = scalar_lea.smem [#allocation10], 4
          %561 = sst [smem:[%s560]] 128
          %s562 = scalar_lea.smem [#allocation10], 5
          %563 = sst [smem:[%s562]] 8
          %565 = dma.general (%p523), %s547, %s548, %s527, %s508, [#allocation9], [#allocation10], %s545, 0
        $region48: #{tpu_custom_call.1} parent=31 // pred_fallthru
          _
      $region32: #{tpu_custom_call.1} parent=5 // pred_fallthru
        _
      %p566 = scmp.le.s32.totalorder 2, %s18
      // Predicated region
      $region49: #{tpu_custom_call.1} parent=5 // pred_check
        %p567 = pneg %p566
      $region50: #{tpu_custom_call.1} parent=5 // pred_check_branch
        %569 = sbr.rel (%p567) target = $region52
      $region51: #{tpu_custom_call.1} parent=5 // pred_region
        %s570 = ssub.s32 %s18, 2
        // Predicated region
        $region53: #{tpu_custom_call.1} parent=51 // pred_check
          %p571 = pneg %p145
        $region54: #{tpu_custom_call.1} parent=51 // pred_check_branch
          %573 = sbr.rel (%p571) target = $region56
        $region55: #{tpu_custom_call.1} parent=51 // pred_region
          %s574 = sand.u32 %s130, 1
          %s575 = scalar_lea.sflag [#allocation4], %s574
          %s576 = sand.u32 %s130, 1
          %s577 = smul.addr %s576, 600
          %s578 = scalar_lea.vmem [#allocation8], %s577
          %579 = dma.done %s575, 9600
        $region56: #{tpu_custom_call.1} parent=51 // pred_fallthru
          _
      $region52: #{tpu_custom_call.1} parent=5 // pred_fallthru
        _
    $region6: #{tpu_custom_call.1} parent=1 // loop_footer
      %s22 = sadd.s32 1, %s18
    $region7: #{tpu_custom_call.1} parent=1 // loop_footer_branch
      %17 = sbr.rel target = $region3
    $region8: #{tpu_custom_call.1} parent=1 // loop_exit
      _
    %580 = vsyncpa [#allocation3], 1
    %s581 = scalar_lea.sflag [#allocation3], 1
    %582 = vsyncpa %s581, 1
    %583 = vsyncpa [#allocation6], 1
    %s584 = scalar_lea.sflag [#allocation6], 1
    %585 = vsyncpa %s584, 1
    %586 = vsyncpa [#allocation4], 1
    %s587 = scalar_lea.sflag [#allocation4], 1
    %588 = vsyncpa %s587, 1

</llo_original>
